<compile_context>
chip_gen: v7x
topology: tpu7x:2x2x1
jax: 0.10.0
libtpu: 0.0.40
codegen_flags: <defaults>
</compile_context>

<pallas_src>
import jax
import jax.numpy as jnp
from jax.experimental import pallas as pl
from jax.experimental.pallas import tpu as pltpu

INPUT_DIM = 2
TIME_DIM = 1
IN_FEAT = INPUT_DIM + TIME_DIM          # 3
HIDDEN_DIM = 128
OUTPUT_DIM = 2
TM_MAX = 256                            # row-tile upper bound (sweep 128-512)


def _round_up(a, m):
    return ((a + m - 1) // m) * m


def mlp_kernel(h_ref, w1_ref, b1_ref, w2_ref, b2_ref, w3_ref, b3_ref,
               w4_ref, b4_ref, out_ref):
    h = h_ref[...]                                        # (TM, 3)   f32
    w1 = w1_ref[...]                                      # (3, 128)  f32

    # Layer 1: K=3 -> three broadcast FMAs on the VPU (no zero-padded matmul).
    z = h[:, 0:1] * w1[0:1, :]
    for j in range(1, IN_FEAT):
        z = z + h[:, j:j + 1] * w1[j:j + 1, :]
    z = jnp.maximum(z + b1_ref[...], 0.0)                 # (TM, 128) f32

    # Hidden layers: bf16 MXU operands, f32 accumulation, f32 bias/ReLU.
    z = jnp.dot(z.astype(jnp.bfloat16), w2_ref[...],
                preferred_element_type=jnp.float32) + b2_ref[...]
    z = jnp.maximum(z, 0.0)
    z = jnp.dot(z.astype(jnp.bfloat16), w3_ref[...],
                preferred_element_type=jnp.float32) + b3_ref[...]
    z = jnp.maximum(z, 0.0)

    # Output layer: narrow (TM, 2) result written directly (no 128-lane pad).
    out_ref[...] = (jnp.dot(z.astype(jnp.bfloat16), w4_ref[...],
                            preferred_element_type=jnp.float32)
                    + b4_ref[...])


def init_params(key):
    """Deterministic synthetic params. Weights stored as (in, out)."""
    ks = jax.random.split(key, 8)

    def lin(kw, kb, fan_in, fan_out):
        bound = 1.0 / jnp.sqrt(fan_in)
        w = jax.random.uniform(kw, (fan_in, fan_out), jnp.float32, -bound, bound)
        b = jax.random.uniform(kb, (fan_out,), jnp.float32, -bound, bound)
        return w, b

    w1, b1 = lin(ks[0], ks[1], IN_FEAT, HIDDEN_DIM)
    w2, b2 = lin(ks[2], ks[3], HIDDEN_DIM, HIDDEN_DIM)
    w3, b3 = lin(ks[4], ks[5], HIDDEN_DIM, HIDDEN_DIM)
    w4, b4 = lin(ks[6], ks[7], HIDDEN_DIM, OUTPUT_DIM)
    return (w1, b1, w2, b2, w3, b3, w4, b4)


def mlp_forward(params, x, t):
    """Mirrors MLP.forward: flatten, concat time, run fused MLP kernel, reshape."""
    w1, b1, w2, b2, w3, b3, w4, b4 = params
    sz = x.shape
    xf = x.reshape(-1, INPUT_DIM).astype(jnp.float32)                  # (N, 2)
    n = xf.shape[0]
    tf = t.reshape(-1, TIME_DIM).astype(jnp.float32).reshape(-1, 1)
    tf = jnp.broadcast_to(tf, (n, 1))                                  # (N, 1)
    h = jnp.concatenate([xf, tf], axis=1)                              # (N, 3)

    # Row tile: large for throughput, shrunk for tiny N (keeps sublane multiple).
    tm = min(TM_MAX, _round_up(n, 8))
    n_pad = _round_up(n, tm)
    h_p = jnp.pad(h, ((0, n_pad - n), (0, 0)))      # pad rows only; features stay narrow

    # bf16 MXU operands for the hidden/output matmuls (f32 accumulate in-kernel).
    w2b = w2.astype(jnp.bfloat16)
    w3b = w3.astype(jnp.bfloat16)
    w4b = w4.astype(jnp.bfloat16)
    b1r = b1.reshape(1, HIDDEN_DIM)
    b2r = b2.reshape(1, HIDDEN_DIM)
    b3r = b3.reshape(1, HIDDEN_DIM)
    b4r = b4.reshape(1, OUTPUT_DIM)

    grid = (n_pad // tm,)
    row_in_spec = pl.BlockSpec((tm, IN_FEAT), lambda i: (i, 0))
    row_out_spec = pl.BlockSpec((tm, OUTPUT_DIM), lambda i: (i, 0))
    w1_spec = pl.BlockSpec((IN_FEAT, HIDDEN_DIM), lambda i: (0, 0))
    wh_spec = pl.BlockSpec((HIDDEN_DIM, HIDDEN_DIM), lambda i: (0, 0))
    w4_spec = pl.BlockSpec((HIDDEN_DIM, OUTPUT_DIM), lambda i: (0, 0))
    bh_spec = pl.BlockSpec((1, HIDDEN_DIM), lambda i: (0, 0))
    b4_spec = pl.BlockSpec((1, OUTPUT_DIM), lambda i: (0, 0))

    out_p = pl.pallas_call(
        mlp_kernel,
        out_shape=jax.ShapeDtypeStruct((n_pad, OUTPUT_DIM), jnp.float32),
        grid_spec=pltpu.PrefetchScalarGridSpec(
            num_scalar_prefetch=0,
            grid=grid,
            in_specs=[row_in_spec, w1_spec, bh_spec, wh_spec, bh_spec,
                      wh_spec, bh_spec, w4_spec, b4_spec],
            out_specs=row_out_spec,
        ),
        compiler_params=pltpu.CompilerParams(
            dimension_semantics=("parallel",)),
    )(h_p, w1, b1r, w2b, b2r, w3b, b3r, w4b, b4r)

    out = out_p[:n]                                                    # (N, 2)
    # output_dim == input_dim -> reshape back to original x shape
    return out.reshape(sz)


def mlp_reference(params, x, t):
    """Pure-JAX f32 reference (module semantics) for correctness check."""
    w1, b1, w2, b2, w3, b3, w4, b4 = params
    sz = x.shape
    xf = x.reshape(-1, INPUT_DIM).astype(jnp.float32)
    n = xf.shape[0]
    tf = jnp.broadcast_to(
        t.reshape(-1, TIME_DIM).astype(jnp.float32).reshape(-1, 1), (n, 1))
    h = jnp.concatenate([xf, tf], axis=1)
    h = jnp.maximum(h @ w1 + b1, 0.0)
    h = jnp.maximum(h @ w2 + b2, 0.0)
    h = jnp.maximum(h @ w3 + b3, 0.0)
    y = h @ w4 + b4
    return y.reshape(sz)


if __name__ == "__main__":
    key = jax.random.PRNGKey(0)
    kp, kx, kt, kx2, kt2 = jax.random.split(key, 5)
    params = init_params(kp)

    # small shapes consistent with the forward: batch=8, input_dim=2, time_dim=1
    x = jax.random.normal(kx, (8, INPUT_DIM), jnp.float32)
    t = jax.random.normal(kt, (8, TIME_DIM), jnp.float32)
    out = jax.block_until_ready(mlp_forward(params, x, t))
    ref = mlp_reference(params, x, t)
    assert out.shape == x.shape
    # tolerance covers bf16 MXU operands (f32 accumulation) vs f32 reference
    assert jnp.allclose(out, ref, atol=5e-2, rtol=5e-2)

    # second case exercising the multi-step grid + row-padding path
    x2 = jax.random.normal(kx2, (600, INPUT_DIM), jnp.float32)
    t2 = jax.random.normal(kt2, (600, TIME_DIM), jnp.float32)
    out2 = jax.block_until_ready(mlp_forward(params, x2, t2))
    ref2 = mlp_reference(params, x2, t2)
    assert out2.shape == x2.shape
    assert jnp.allclose(out2, ref2, atol=5e-2, rtol=5e-2)

    print("KERNEL_OK")
</pallas_src>

<mosaic_0001>
module attributes {stable_mosaic.version = 11 : i64} {
  func.func @mlp_kernel(%arg0: i32, %arg1: memref<8x3xf32, #tpu.memory_space<vmem>>, %arg2: memref<3x128xf32, #tpu.memory_space<vmem>>, %arg3: memref<1x128xf32, #tpu.memory_space<vmem>>, %arg4: memref<128x128xbf16, #tpu.memory_space<vmem>>, %arg5: memref<1x128xf32, #tpu.memory_space<vmem>>, %arg6: memref<128x128xbf16, #tpu.memory_space<vmem>>, %arg7: memref<1x128xf32, #tpu.memory_space<vmem>>, %arg8: memref<128x2xbf16, #tpu.memory_space<vmem>>, %arg9: memref<1x2xf32, #tpu.memory_space<vmem>>, %arg10: memref<8x2xf32, #tpu.memory_space<vmem>>) attributes {dimension_semantics = [#tpu.dimension_semantics<parallel>], iteration_bounds = array<i64: 1>, scalar_prefetch = 0 : i64, scratch_operands = 0 : i64, tpu.core_type = #tpu.core_type<tc>, window_params = [{transform_indices = @transform_0, window_bounds = array<i64: 8, 3>}, {pipeline_mode = #tpu.pipeline_mode<synchronous>, transform_indices = @transform_1, window_bounds = array<i64: 3, 128>}, {pipeline_mode = #tpu.pipeline_mode<synchronous>, transform_indices = @transform_2, window_bounds = array<i64: 1, 128>}, {pipeline_mode = #tpu.pipeline_mode<synchronous>, transform_indices = @transform_3, window_bounds = array<i64: 128, 128>}, {pipeline_mode = #tpu.pipeline_mode<synchronous>, transform_indices = @transform_4, window_bounds = array<i64: 1, 128>}, {pipeline_mode = #tpu.pipeline_mode<synchronous>, transform_indices = @transform_5, window_bounds = array<i64: 128, 128>}, {pipeline_mode = #tpu.pipeline_mode<synchronous>, transform_indices = @transform_6, window_bounds = array<i64: 1, 128>}, {pipeline_mode = #tpu.pipeline_mode<synchronous>, transform_indices = @transform_7, window_bounds = array<i64: 128, 2>}, {pipeline_mode = #tpu.pipeline_mode<synchronous>, transform_indices = @transform_8, window_bounds = array<i64: 1, 2>}, {transform_indices = @transform_9, window_bounds = array<i64: 8, 2>}]} {
    %c0 = arith.constant 0 : index
    %c0_0 = arith.constant 0 : index
    %0 = vector.load %arg1[%c0, %c0_0] : memref<8x3xf32, #tpu.memory_space<vmem>>, vector<8x3xf32>
    %c0_1 = arith.constant 0 : index
    %c0_2 = arith.constant 0 : index
    %1 = vector.load %arg2[%c0_1, %c0_2] : memref<3x128xf32, #tpu.memory_space<vmem>>, vector<3x128xf32>
    %2 = vector.extract_strided_slice %0 {offsets = [0, 0], sizes = [8, 1], strides = [1, 1]} : vector<8x3xf32> to vector<8x1xf32>
    %3 = vector.extract_strided_slice %1 {offsets = [0, 0], sizes = [1, 128], strides = [1, 1]} : vector<3x128xf32> to vector<1x128xf32>
    %4 = vector.broadcast %2 : vector<8x1xf32> to vector<8x128xf32>
    %5 = vector.broadcast %3 : vector<1x128xf32> to vector<8x128xf32>
    %6 = arith.mulf %4, %5 : vector<8x128xf32>
    %7 = vector.extract_strided_slice %0 {offsets = [0, 1], sizes = [8, 1], strides = [1, 1]} : vector<8x3xf32> to vector<8x1xf32>
    %8 = vector.extract_strided_slice %1 {offsets = [1, 0], sizes = [1, 128], strides = [1, 1]} : vector<3x128xf32> to vector<1x128xf32>
    %9 = vector.broadcast %7 : vector<8x1xf32> to vector<8x128xf32>
    %10 = vector.broadcast %8 : vector<1x128xf32> to vector<8x128xf32>
    %11 = arith.mulf %9, %10 : vector<8x128xf32>
    %12 = arith.addf %6, %11 : vector<8x128xf32>
    %13 = vector.extract_strided_slice %0 {offsets = [0, 2], sizes = [8, 1], strides = [1, 1]} : vector<8x3xf32> to vector<8x1xf32>
    %14 = vector.extract_strided_slice %1 {offsets = [2, 0], sizes = [1, 128], strides = [1, 1]} : vector<3x128xf32> to vector<1x128xf32>
    %15 = vector.broadcast %13 : vector<8x1xf32> to vector<8x128xf32>
    %16 = vector.broadcast %14 : vector<1x128xf32> to vector<8x128xf32>
    %17 = arith.mulf %15, %16 : vector<8x128xf32>
    %18 = arith.addf %12, %17 : vector<8x128xf32>
    %c0_3 = arith.constant 0 : index
    %c0_4 = arith.constant 0 : index
    %19 = vector.load %arg3[%c0_3, %c0_4] : memref<1x128xf32, #tpu.memory_space<vmem>>, vector<1x128xf32>
    %20 = vector.broadcast %19 : vector<1x128xf32> to vector<8x128xf32>
    %21 = arith.addf %18, %20 : vector<8x128xf32>
    %cst = arith.constant 0.000000e+00 : f32
    %22 = vector.broadcast %cst : f32 to vector<8x128xf32>
    %23 = arith.maximumf %21, %22 : vector<8x128xf32>
    %24 = arith.truncf %23 : vector<8x128xf32> to vector<8x128xbf16>
    %c0_5 = arith.constant 0 : index
    %c0_6 = arith.constant 0 : index
    %25 = vector.load %arg4[%c0_5, %c0_6] : memref<128x128xbf16, #tpu.memory_space<vmem>>, vector<128x128xbf16>
    %cst_7 = arith.constant dense<0.000000e+00> : vector<8x128xf32>
    %26 = tpu.matmul %24, %25, %cst_7 {dimension_numbers = #tpu.dot_dimension_numbers<[1], [0], [0], [1], [0, 0, 1, 1], [], []>} : vector<8x128xbf16>, vector<128x128xbf16>, vector<8x128xf32> -> vector<8x128xf32>
    %c0_8 = arith.constant 0 : index
    %c0_9 = arith.constant 0 : index
    %27 = vector.load %arg5[%c0_8, %c0_9] : memref<1x128xf32, #tpu.memory_space<vmem>>, vector<1x128xf32>
    %28 = vector.broadcast %27 : vector<1x128xf32> to vector<8x128xf32>
    %29 = arith.addf %26, %28 : vector<8x128xf32>
    %cst_10 = arith.constant 0.000000e+00 : f32
    %30 = vector.broadcast %cst_10 : f32 to vector<8x128xf32>
    %31 = arith.maximumf %29, %30 : vector<8x128xf32>
    %32 = arith.truncf %31 : vector<8x128xf32> to vector<8x128xbf16>
    %c0_11 = arith.constant 0 : index
    %c0_12 = arith.constant 0 : index
    %33 = vector.load %arg6[%c0_11, %c0_12] : memref<128x128xbf16, #tpu.memory_space<vmem>>, vector<128x128xbf16>
    %cst_13 = arith.constant dense<0.000000e+00> : vector<8x128xf32>
    %34 = tpu.matmul %32, %33, %cst_13 {dimension_numbers = #tpu.dot_dimension_numbers<[1], [0], [0], [1], [0, 0, 1, 1], [], []>} : vector<8x128xbf16>, vector<128x128xbf16>, vector<8x128xf32> -> vector<8x128xf32>
    %c0_14 = arith.constant 0 : index
    %c0_15 = arith.constant 0 : index
    %35 = vector.load %arg7[%c0_14, %c0_15] : memref<1x128xf32, #tpu.memory_space<vmem>>, vector<1x128xf32>
    %36 = vector.broadcast %35 : vector<1x128xf32> to vector<8x128xf32>
    %37 = arith.addf %34, %36 : vector<8x128xf32>
    %cst_16 = arith.constant 0.000000e+00 : f32
    %38 = vector.broadcast %cst_16 : f32 to vector<8x128xf32>
    %39 = arith.maximumf %37, %38 : vector<8x128xf32>
    %40 = arith.truncf %39 : vector<8x128xf32> to vector<8x128xbf16>
    %c0_17 = arith.constant 0 : index
    %c0_18 = arith.constant 0 : index
    %41 = vector.load %arg8[%c0_17, %c0_18] : memref<128x2xbf16, #tpu.memory_space<vmem>>, vector<128x2xbf16>
    %cst_19 = arith.constant dense<0.000000e+00> : vector<8x2xf32>
    %42 = tpu.matmul %40, %41, %cst_19 {dimension_numbers = #tpu.dot_dimension_numbers<[1], [0], [0], [1], [0, 0, 1, 1], [], []>} : vector<8x128xbf16>, vector<128x2xbf16>, vector<8x2xf32> -> vector<8x2xf32>
    %c0_20 = arith.constant 0 : index
    %c0_21 = arith.constant 0 : index
    %43 = vector.load %arg9[%c0_20, %c0_21] : memref<1x2xf32, #tpu.memory_space<vmem>>, vector<1x2xf32>
    %44 = vector.broadcast %43 : vector<1x2xf32> to vector<8x2xf32>
    %45 = arith.addf %42, %44 : vector<8x2xf32>
    %c0_22 = arith.constant 0 : index
    %c0_23 = arith.constant 0 : index
    %46 = vector.load %arg10[%c0_22, %c0_23] : memref<8x2xf32, #tpu.memory_space<vmem>>, vector<8x2xf32>
    tpu.vector_store %arg10[%c0_22, %c0_23], %45 {strides = array<i32>} : memref<8x2xf32, #tpu.memory_space<vmem>>, vector<8x2xf32>,
    return
  }
  func.func @transform_0(%arg0: i32) -> (i32, i32) {
    %c0_i32 = arith.constant 0 : i32
    %c0_i32_0 = arith.constant 0 : i32
    return %arg0, %c0_i32 : i32, i32
  }
  func.func @transform_1(%arg0: i32) -> (i32, i32) {
    %c0_i32 = arith.constant 0 : i32
    %c0_i32_0 = arith.constant 0 : i32
    %c0_i32_1 = arith.constant 0 : i32
    return %c0_i32, %c0_i32_0 : i32, i32
  }
  func.func @transform_2(%arg0: i32) -> (i32, i32) {
    %c0_i32 = arith.constant 0 : i32
    %c0_i32_0 = arith.constant 0 : i32
    %c0_i32_1 = arith.constant 0 : i32
    return %c0_i32, %c0_i32_0 : i32, i32
  }
  func.func @transform_3(%arg0: i32) -> (i32, i32) {
    %c0_i32 = arith.constant 0 : i32
    %c0_i32_0 = arith.constant 0 : i32
    %c0_i32_1 = arith.constant 0 : i32
    return %c0_i32, %c0_i32_0 : i32, i32
  }
  func.func @transform_4(%arg0: i32) -> (i32, i32) {
    %c0_i32 = arith.constant 0 : i32
    %c0_i32_0 = arith.constant 0 : i32
    %c0_i32_1 = arith.constant 0 : i32
    return %c0_i32, %c0_i32_0 : i32, i32
  }
  func.func @transform_5(%arg0: i32) -> (i32, i32) {
    %c0_i32 = arith.constant 0 : i32
    %c0_i32_0 = arith.constant 0 : i32
    %c0_i32_1 = arith.constant 0 : i32
    return %c0_i32, %c0_i32_0 : i32, i32
  }
  func.func @transform_6(%arg0: i32) -> (i32, i32) {
    %c0_i32 = arith.constant 0 : i32
    %c0_i32_0 = arith.constant 0 : i32
    %c0_i32_1 = arith.constant 0 : i32
    return %c0_i32, %c0_i32_0 : i32, i32
  }
  func.func @transform_7(%arg0: i32) -> (i32, i32) {
    %c0_i32 = arith.constant 0 : i32
    %c0_i32_0 = arith.constant 0 : i32
    %c0_i32_1 = arith.constant 0 : i32
    return %c0_i32, %c0_i32_0 : i32, i32
  }
  func.func @transform_8(%arg0: i32) -> (i32, i32) {
    %c0_i32 = arith.constant 0 : i32
    %c0_i32_0 = arith.constant 0 : i32
    %c0_i32_1 = arith.constant 0 : i32
    return %c0_i32, %c0_i32_0 : i32, i32
  }
  func.func @transform_9(%arg0: i32) -> (i32, i32) {
    %c0_i32 = arith.constant 0 : i32
    %c0_i32_0 = arith.constant 0 : i32
    return %arg0, %c0_i32 : i32, i32
  }
}

</mosaic_0001>

<llo_original>
// kernel: tpu_custom_call.1
$region0: #{tpu_custom_call.1}
  #allocation0 [shape = 'u32[]', space=smem, size = 0x4, offset = 0x4, fixed_abs, tag = 'smem constant byte address 0x4 - core index']
  #allocation1 [shape = 'u32[144,128]{1,0:T(1,128)}', space=vmem, size = 0x12000, scoped, tag = 'internal scratch']
  %s0 = inlined_call_operand.vmem [shape: f32[8,3], index: 0, kind: input, shape index: {}]
  %s1 = inlined_call_operand.vmem [shape: f32[3,128], index: 1, kind: input, shape index: {}]
  %s2 = inlined_call_operand.vmem [shape: f32[1,128], index: 2, kind: input, shape index: {}]
  %s3 = inlined_call_operand.vmem [shape: bf16[128,128], index: 3, kind: input, shape index: {}]
  %s4 = inlined_call_operand.vmem [shape: f32[1,128], index: 4, kind: input, shape index: {}]
  %s5 = inlined_call_operand.hbm [shape: bf16[128,128], index: 5, kind: input, shape index: {}]
  %s6 = inlined_call_operand.vmem [shape: f32[1,128], index: 6, kind: input, shape index: {}]
  %s7 = inlined_call_operand.vmem [shape: bf16[128,2], index: 7, kind: input, shape index: {}]
  %s8 = inlined_call_operand.vmem [shape: f32[1,2], index: 8, kind: input, shape index: {}]
  %s9 = inlined_call_operand.vmem [shape: f32[8,2], index: 9, kind: output, shape index: {}]
  %s10 = sld [smem:[#allocation0]]
  $region50: #{tpu_custom_call.1} parent=0
    _
  %s12 = ssub.s32 1, %s10
  %s13 = scalar_select 0, %s12, %s10
  $region1: #{tpu_custom_call.1} parent=0
    #allocation2 [shape = 'u8[32768]{0}', space=vmem, size = 0x8000, scoped, tag = 'input window, operand 5, single buffered']
    #allocation3 [shape = 's32[1]{0}', space=sflag, size = 0x4, scoped, tag = 'scoped memory for tpu_custom_call.1']
    %14 = vsyncpa [#allocation3], 0
    // Predicated region
    $region2: #{tpu_custom_call.1} parent=1 // pred_check
      _
    $region3: #{tpu_custom_call.1} parent=1 // pred_check_branch
      %16 = sbr.rel (0) target = $region5
    $region4: #{tpu_custom_call.1} parent=1 // pred_region
      _
    $region5: #{tpu_custom_call.1} parent=1 // pred_fallthru
      _
    // Predicated region
    $region6: #{tpu_custom_call.1} parent=1 // pred_check
      _
    $region7: #{tpu_custom_call.1} parent=1 // pred_check_branch
      %18 = sbr.rel (0) target = $region9
    $region8: #{tpu_custom_call.1} parent=1 // pred_region
      _
    $region9: #{tpu_custom_call.1} parent=1 // pred_fallthru
      _
    // Predicated region
    $region10: #{tpu_custom_call.1} parent=1 // pred_check
      _
    $region11: #{tpu_custom_call.1} parent=1 // pred_check_branch
      %20 = sbr.rel (0) target = $region13
    $region12: #{tpu_custom_call.1} parent=1 // pred_region
      _
    $region13: #{tpu_custom_call.1} parent=1 // pred_fallthru
      _
    // Predicated region
    $region14: #{tpu_custom_call.1} parent=1 // pred_check
      _
    $region15: #{tpu_custom_call.1} parent=1 // pred_check_branch
      %22 = sbr.rel (0) target = $region17
    $region16: #{tpu_custom_call.1} parent=1 // pred_region
      _
    $region17: #{tpu_custom_call.1} parent=1 // pred_fallthru
      _
    // Predicated region
    $region18: #{tpu_custom_call.1} parent=1 // pred_check
      _
    $region19: #{tpu_custom_call.1} parent=1 // pred_check_branch
      %24 = sbr.rel (0) target = $region21
    $region20: #{tpu_custom_call.1} parent=1 // pred_region
      _
    $region21: #{tpu_custom_call.1} parent=1 // pred_fallthru
      _
    // Predicated region
    $region22: #{tpu_custom_call.1} parent=1 // pred_check
      _
    $region23: #{tpu_custom_call.1} parent=1 // pred_check_branch
      %26 = sbr.rel (0) target = $region25
    $region24: #{tpu_custom_call.1} parent=1 // pred_region
      %s28 = ssub.s32 1024, 1024
      %29 = vsyncadd [#allocation3], %s28
      %s30 = sshll.u32 [#allocation2], 4
      %s31 = int_to_ptr.vmem [resolvable:$true] %s30
      %36 = dma.hbm_to_vmem [thread:$0]  %s5, 1024, %s31, [#allocation3], 64, 64, 4
    $region25: #{tpu_custom_call.1} parent=1 // pred_fallthru
      _
    // Predicated region
    $region26: #{tpu_custom_call.1} parent=1 // pred_check
      _
    $region27: #{tpu_custom_call.1} parent=1 // pred_check_branch
      %38 = sbr.rel (0) target = $region29
    $region28: #{tpu_custom_call.1} parent=1 // pred_region
      _
    $region29: #{tpu_custom_call.1} parent=1 // pred_fallthru
      _
    // Predicated region
    $region30: #{tpu_custom_call.1} parent=1 // pred_check
      _
    $region31: #{tpu_custom_call.1} parent=1 // pred_check_branch
      %40 = sbr.rel (0) target = $region33
    $region32: #{tpu_custom_call.1} parent=1 // pred_region
      _
    $region33: #{tpu_custom_call.1} parent=1 // pred_fallthru
      _
    // Predicated region
    $region34: #{tpu_custom_call.1} parent=1 // pred_check
      _
    $region35: #{tpu_custom_call.1} parent=1 // pred_check_branch
      %42 = sbr.rel (0) target = $region37
    $region36: #{tpu_custom_call.1} parent=1 // pred_region
      _
    $region37: #{tpu_custom_call.1} parent=1 // pred_fallthru
      _
    // Predicated region
    $region38: #{tpu_custom_call.1} parent=1 // pred_check
      _
    $region39: #{tpu_custom_call.1} parent=1 // pred_check_branch
      %44 = sbr.rel (0) target = $region41
    $region40: #{tpu_custom_call.1} parent=1 // pred_region
      %45 = dma.done [#allocation3], 1024
    $region41: #{tpu_custom_call.1} parent=1 // pred_fallthru
      _
    %v47 = vld [vmem:[%s0] sm:$0xff]
    %v48 = vld [vmem:[%s1] sm:$0x7]
    %50 = vset.pattern.permute.xlu0 0
    %51 = vperm.xlu0 %50, %v47
    %v52 = vpop.permute.xlu0 %51
    %v54 = vlaneseq
    %v55 = vshrl.u32 %v54, 7
    %v56 = vsub.s32 0, %v55
    %v57 = vrot.slane %v48, %v56
    %v58 = vmul.f32 %v52, %v57
    %59 = vset.pattern.permute.xlu0 1
    %60 = vperm.xlu0 %59, %v47
    %v61 = vpop.permute.xlu0 %60
    %v63 = vlaneseq
    %v64 = vshrl.u32 %v63, 7
    %v65 = vsub.s32 1, %v64
    %v66 = vrot.slane %v48, %v65
    %v67 = vmul.f32 %v61, %v66
    %v68 = vadd.f32 %v58, %v67
    %69 = vset.pattern.permute.xlu0 2
    %70 = vperm.xlu0 %69, %v47
    %v71 = vpop.permute.xlu0 %70
    %v73 = vlaneseq
    %v74 = vshrl.u32 %v73, 7
    %v75 = vsub.s32 2, %v74
    %v76 = vrot.slane %v48, %v75
    %v77 = vmul.f32 %v71, %v76
    %v78 = vadd.f32 %v68, %v77
    %v79 = vld [vmem:[%s2] sm:$0x1]
    %v81 = vlaneseq
    %v82 = vshrl.u32 %v81, 7
    %v83 = vsub.s32 0, %v82
    %v84 = vrot.slane %v79, %v83
    %v86 = vadd.f32 %v78, %v84
    %v87 = vmax.f32 %v86, 0.0
    %v88 = vpack.c.bf16 %v87, %v87
    %v89 = vld [vmem:[%s3] sm:$0xf]
    %v90 = vld [vmem:[%s3 + $0x4] sm:$0xf]
    %v91 = vld [vmem:[%s3 + $0x8] sm:$0xf]
    %v92 = vld [vmem:[%s3 + $0xc] sm:$0xf]
    %v93 = vld [vmem:[%s3 + $0x10] sm:$0xf]
    %v94 = vld [vmem:[%s3 + $0x14] sm:$0xf]
    %v95 = vld [vmem:[%s3 + $0x18] sm:$0xf]
    %v96 = vld [vmem:[%s3 + $0x1c] sm:$0xf]
    %v97 = vld [vmem:[%s3 + $0x20] sm:$0xf]
    %v98 = vld [vmem:[%s3 + $0x24] sm:$0xf]
    %v99 = vld [vmem:[%s3 + $0x28] sm:$0xf]
    %v100 = vld [vmem:[%s3 + $0x2c] sm:$0xf]
    %v101 = vld [vmem:[%s3 + $0x30] sm:$0xf]
    %v102 = vld [vmem:[%s3 + $0x34] sm:$0xf]
    %v103 = vld [vmem:[%s3 + $0x38] sm:$0xf]
    %v104 = vld [vmem:[%s3 + $0x3c] sm:$0xf]
    %v105 = vld [vmem:[%s4] sm:$0x1]
    %v107 = vlaneseq
    %v108 = vshrl.u32 %v107, 7
    %v109 = vsub.s32 0, %v108
    %v110 = vrot.slane %v105, %v109
    %v128 = vunpack.c.l.b16 %v89
    %v129 = vunpack.c.l.b16 %v90
    %v130 = vunpack.c.l.b16 %v91
    %v131 = vunpack.c.l.b16 %v92
    %v132 = vunpack.c.l.b16 %v93
    %v133 = vunpack.c.l.b16 %v94
    %v134 = vunpack.c.l.b16 %v95
    %v135 = vunpack.c.l.b16 %v96
    %v136 = vunpack.c.l.b16 %v97
    %v137 = vunpack.c.l.b16 %v98
    %v138 = vunpack.c.l.b16 %v99
    %v139 = vunpack.c.l.b16 %v100
    %v140 = vunpack.c.l.b16 %v101
    %v141 = vunpack.c.l.b16 %v102
    %v142 = vunpack.c.l.b16 %v103
    %v143 = vunpack.c.l.b16 %v104
    %v144 = vpack.c.b16 %v129, %v128
    %v145 = vpack.c.b16 %v131, %v130
    %v146 = vpack.c.b16 %v133, %v132
    %v147 = vpack.c.b16 %v135, %v134
    %v148 = vpack.c.b16 %v137, %v136
    %v149 = vpack.c.b16 %v139, %v138
    %v150 = vpack.c.b16 %v141, %v140
    %v151 = vpack.c.b16 %v143, %v142
    %160 = vmatprep.subr.bf16.mxu0 0
    %161 = vmatpush1.bf16.msra.mxu0 %v144
    %162 = vmatprep.subr.bf16.mxu0 0
    %163 = vmatpush1.bf16.msra.mxu0 %v145
    %164 = vmatprep.subr.bf16.mxu0 0
    %165 = vmatpush1.bf16.msra.mxu0 %v146
    %166 = vmatprep.subr.bf16.mxu0 0
    %167 = vmatpush1.bf16.msra.mxu0 %v147
    %168 = vmatprep.subr.bf16.mxu0 0
    %169 = vmatpush1.bf16.msra.mxu0 %v148
    %170 = vmatprep.subr.bf16.mxu0 0
    %171 = vmatpush1.bf16.msra.mxu0 %v149
    %172 = vmatprep.subr.bf16.mxu0 0
    %173 = vmatpush1.bf16.msra.mxu0 %v150
    %174 = vmatprep.subr.bf16.mxu0 0
    %175 = vmatpush1.bf16.msra.mxu0 %v151
    %176 = vmatprep.subr.bf16.mxu0 0
    %177 = vmatpush1.bf16.msra.mxu0 0
    %178 = vmatprep.subr.bf16.mxu0 0
    %179 = vmatpush1.bf16.msra.mxu0 0
    %180 = vmatprep.subr.bf16.mxu0 0
    %181 = vmatpush1.bf16.msra.mxu0 0
    %182 = vmatprep.subr.bf16.mxu0 0
    %183 = vmatpush1.bf16.msra.mxu0 0
    %184 = vmatprep.subr.bf16.mxu0 0
    %185 = vmatpush1.bf16.msra.mxu0 0
    %186 = vmatprep.subr.bf16.mxu0 0
    %187 = vmatpush1.bf16.msra.mxu0 0
    %188 = vmatprep.subr.bf16.mxu0 0
    %189 = vmatpush1.bf16.msra.mxu0 0
    %190 = vmatprep.subr.bf16.mxu0 0
    %191 = vmatpush1.bf16.msra.mxu0 0
    %192 = vmatprep.mubr.bf16.mxu0 0
    %193 = vmatmul.mubr.bf16.gmra.mrb[0].mxu0 %v88
    %v194 = vpop.f32.mrb[0].mxu0
    %v195 = vadd.f32 %v110, %v194
    %v196 = vpop.f32.mrb[0].mxu0
    %v197 = vpop.f32.mrb[0].mxu0
    %v198 = vpop.f32.mrb[0].mxu0
    %199 = vdwg.mxu0
    %v200 = vmax.f32 %v195, 0.0
    %v201 = vpack.c.bf16 %v200, %v200
    %v202 = vld [vmem:[#allocation2] sm:$0xf]
    %v203 = vld [vmem:[#allocation2 + $0x4] sm:$0xf]
    %v204 = vld [vmem:[#allocation2 + $0x8] sm:$0xf]
    %v205 = vld [vmem:[#allocation2 + $0xc] sm:$0xf]
    %v206 = vld [vmem:[#allocation2 + $0x10] sm:$0xf]
    %v207 = vld [vmem:[#allocation2 + $0x14] sm:$0xf]
    %v208 = vld [vmem:[#allocation2 + $0x18] sm:$0xf]
    %v209 = vld [vmem:[#allocation2 + $0x1c] sm:$0xf]
    %v210 = vld [vmem:[#allocation2 + $0x20] sm:$0xf]
    %v211 = vld [vmem:[#allocation2 + $0x24] sm:$0xf]
    %v212 = vld [vmem:[#allocation2 + $0x28] sm:$0xf]
    %v213 = vld [vmem:[#allocation2 + $0x2c] sm:$0xf]
    %v214 = vld [vmem:[#allocation2 + $0x30] sm:$0xf]
    %v215 = vld [vmem:[#allocation2 + $0x34] sm:$0xf]
    %v216 = vld [vmem:[#allocation2 + $0x38] sm:$0xf]
    %v217 = vld [vmem:[#allocation2 + $0x3c] sm:$0xf]
    %v218 = vld [vmem:[%s6] sm:$0x1]
    %v220 = vlaneseq
    %v221 = vshrl.u32 %v220, 7
    %v222 = vsub.s32 0, %v221
    %v223 = vrot.slane %v218, %v222
    %v241 = vunpack.c.l.b16 %v202
    %v242 = vunpack.c.l.b16 %v203
    %v243 = vunpack.c.l.b16 %v204
    %v244 = vunpack.c.l.b16 %v205
    %v245 = vunpack.c.l.b16 %v206
    %v246 = vunpack.c.l.b16 %v207
    %v247 = vunpack.c.l.b16 %v208
    %v248 = vunpack.c.l.b16 %v209
    %v249 = vunpack.c.l.b16 %v210
    %v250 = vunpack.c.l.b16 %v211
    %v251 = vunpack.c.l.b16 %v212
    %v252 = vunpack.c.l.b16 %v213
    %v253 = vunpack.c.l.b16 %v214
    %v254 = vunpack.c.l.b16 %v215
    %v255 = vunpack.c.l.b16 %v216
    %v256 = vunpack.c.l.b16 %v217
    %v257 = vpack.c.b16 %v242, %v241
    %v258 = vpack.c.b16 %v244, %v243
    %v259 = vpack.c.b16 %v246, %v245
    %v260 = vpack.c.b16 %v248, %v247
    %v261 = vpack.c.b16 %v250, %v249
    %v262 = vpack.c.b16 %v252, %v251
    %v263 = vpack.c.b16 %v254, %v253
    %v264 = vpack.c.b16 %v256, %v255
    %273 = vmatprep.subr.bf16.mxu0 0
    %274 = vmatpush1.bf16.msra.mxu0 %v257
    %275 = vmatprep.subr.bf16.mxu0 0
    %276 = vmatpush1.bf16.msra.mxu0 %v258
    %277 = vmatprep.subr.bf16.mxu0 0
    %278 = vmatpush1.bf16.msra.mxu0 %v259
    %279 = vmatprep.subr.bf16.mxu0 0
    %280 = vmatpush1.bf16.msra.mxu0 %v260
    %281 = vmatprep.subr.bf16.mxu0 0
    %282 = vmatpush1.bf16.msra.mxu0 %v261
    %283 = vmatprep.subr.bf16.mxu0 0
    %284 = vmatpush1.bf16.msra.mxu0 %v262
    %285 = vmatprep.subr.bf16.mxu0 0
    %286 = vmatpush1.bf16.msra.mxu0 %v263
    %287 = vmatprep.subr.bf16.mxu0 0
    %288 = vmatpush1.bf16.msra.mxu0 %v264
    %289 = vmatprep.subr.bf16.mxu0 0
    %290 = vmatpush1.bf16.msra.mxu0 0
    %291 = vmatprep.subr.bf16.mxu0 0
    %292 = vmatpush1.bf16.msra.mxu0 0
    %293 = vmatprep.subr.bf16.mxu0 0
    %294 = vmatpush1.bf16.msra.mxu0 0
    %295 = vmatprep.subr.bf16.mxu0 0
    %296 = vmatpush1.bf16.msra.mxu0 0
    %297 = vmatprep.subr.bf16.mxu0 0
    %298 = vmatpush1.bf16.msra.mxu0 0
    %299 = vmatprep.subr.bf16.mxu0 0
    %300 = vmatpush1.bf16.msra.mxu0 0
    %301 = vmatprep.subr.bf16.mxu0 0
    %302 = vmatpush1.bf16.msra.mxu0 0
    %303 = vmatprep.subr.bf16.mxu0 0
    %304 = vmatpush1.bf16.msra.mxu0 0
    %305 = vmatprep.mubr.bf16.mxu0 0
    %306 = vmatmul.mubr.bf16.gmra.mrb[0].mxu0 %v201
    %v307 = vpop.f32.mrb[0].mxu0
    %v308 = vadd.f32 %v223, %v307
    %v309 = vpop.f32.mrb[0].mxu0
    %v310 = vpop.f32.mrb[0].mxu0
    %v311 = vpop.f32.mrb[0].mxu0
    %312 = vdwg.mxu0
    %v313 = vmax.f32 %v308, 0.0
    %v314 = vpack.c.bf16 %v313, %v313
    %v315 = vld [vmem:[%s7] sm:$0xf]
    %v316 = vld [vmem:[%s7 + $0x4] sm:$0xf]
    %v317 = vld [vmem:[%s7 + $0x8] sm:$0xf]
    %v318 = vld [vmem:[%s7 + $0xc] sm:$0xf]
    %v319 = vld [vmem:[%s7 + $0x10] sm:$0xf]
    %v320 = vld [vmem:[%s7 + $0x14] sm:$0xf]
    %v321 = vld [vmem:[%s7 + $0x18] sm:$0xf]
    %v322 = vld [vmem:[%s7 + $0x1c] sm:$0xf]
    %v323 = vld [vmem:[%s7 + $0x20] sm:$0xf]
    %v324 = vld [vmem:[%s7 + $0x24] sm:$0xf]
    %v325 = vld [vmem:[%s7 + $0x28] sm:$0xf]
    %v326 = vld [vmem:[%s7 + $0x2c] sm:$0xf]
    %v327 = vld [vmem:[%s7 + $0x30] sm:$0xf]
    %v328 = vld [vmem:[%s7 + $0x34] sm:$0xf]
    %v329 = vld [vmem:[%s7 + $0x38] sm:$0xf]
    %v330 = vld [vmem:[%s7 + $0x3c] sm:$0xf]
    %v331 = vld [vmem:[%s8] sm:$0x1]
    %v333 = vlaneseq
    %v334 = vshrl.u32 %v333, 7
    %v335 = vsub.s32 0, %v334
    %v336 = vrot.slane %v331, %v335
    %v354 = vunpack.c.l.b16 %v315
    %v355 = vunpack.c.l.b16 %v316
    %v356 = vunpack.c.l.b16 %v317
    %v357 = vunpack.c.l.b16 %v318
    %v358 = vunpack.c.l.b16 %v319
    %v359 = vunpack.c.l.b16 %v320
    %v360 = vunpack.c.l.b16 %v321
    %v361 = vunpack.c.l.b16 %v322
    %v362 = vunpack.c.l.b16 %v323
    %v363 = vunpack.c.l.b16 %v324
    %v364 = vunpack.c.l.b16 %v325
    %v365 = vunpack.c.l.b16 %v326
    %v366 = vunpack.c.l.b16 %v327
    %v367 = vunpack.c.l.b16 %v328
    %v368 = vunpack.c.l.b16 %v329
    %v369 = vunpack.c.l.b16 %v330
    %v370 = vpack.c.b16 %v355, %v354
    %v371 = vpack.c.b16 %v357, %v356
    %v372 = vpack.c.b16 %v359, %v358
    %v373 = vpack.c.b16 %v361, %v360
    %v374 = vpack.c.b16 %v363, %v362
    %v375 = vpack.c.b16 %v365, %v364
    %v376 = vpack.c.b16 %v367, %v366
    %v377 = vpack.c.b16 %v369, %v368
    %386 = vmatprep.subr.bf16.mxu0 0
    %387 = vmatpush1.bf16.msra.mxu0 %v370
    %388 = vmatprep.subr.bf16.mxu0 0
    %389 = vmatpush1.bf16.msra.mxu0 %v371
    %390 = vmatprep.subr.bf16.mxu0 0
    %391 = vmatpush1.bf16.msra.mxu0 %v372
    %392 = vmatprep.subr.bf16.mxu0 0
    %393 = vmatpush1.bf16.msra.mxu0 %v373
    %394 = vmatprep.subr.bf16.mxu0 0
    %395 = vmatpush1.bf16.msra.mxu0 %v374
    %396 = vmatprep.subr.bf16.mxu0 0
    %397 = vmatpush1.bf16.msra.mxu0 %v375
    %398 = vmatprep.subr.bf16.mxu0 0
    %399 = vmatpush1.bf16.msra.mxu0 %v376
    %400 = vmatprep.subr.bf16.mxu0 0
    %401 = vmatpush1.bf16.msra.mxu0 %v377
    %402 = vmatprep.subr.bf16.mxu0 0
    %403 = vmatpush1.bf16.msra.mxu0 0
    %404 = vmatprep.subr.bf16.mxu0 0
    %405 = vmatpush1.bf16.msra.mxu0 0
    %406 = vmatprep.subr.bf16.mxu0 0
    %407 = vmatpush1.bf16.msra.mxu0 0
    %408 = vmatprep.subr.bf16.mxu0 0
    %409 = vmatpush1.bf16.msra.mxu0 0
    %410 = vmatprep.subr.bf16.mxu0 0
    %411 = vmatpush1.bf16.msra.mxu0 0
    %412 = vmatprep.subr.bf16.mxu0 0
    %413 = vmatpush1.bf16.msra.mxu0 0
    %414 = vmatprep.subr.bf16.mxu0 0
    %415 = vmatpush1.bf16.msra.mxu0 0
    %416 = vmatprep.subr.bf16.mxu0 0
    %417 = vmatpush1.bf16.msra.mxu0 0
    %418 = vmatprep.mubr.bf16.mxu0 0
    %419 = vmatmul.mubr.bf16.gmra.mrb[0].mxu0 %v314
    %v420 = vpop.f32.mrb[0].mxu0
    %v421 = vadd.f32 %v336, %v420
    %v422 = vpop.f32.mrb[0].mxu0
    %v423 = vpop.f32.mrb[0].mxu0
    %v424 = vpop.f32.mrb[0].mxu0
    %425 = vdwg.mxu0
    %vm426 = vcmask 15360
    %427 = vst.msk [vmem:[%s9] sm:$0xff] %vm426, %v421
    // Predicated region
    $region42: #{tpu_custom_call.1} parent=1 // pred_check
      _
    $region43: #{tpu_custom_call.1} parent=1 // pred_check_branch
      %429 = sbr.rel (0) target = $region45
    $region44: #{tpu_custom_call.1} parent=1 // pred_region
      _
    $region45: #{tpu_custom_call.1} parent=1 // pred_fallthru
      _
    // Predicated region
    $region46: #{tpu_custom_call.1} parent=1 // pred_check
      _
    $region47: #{tpu_custom_call.1} parent=1 // pred_check_branch
      %431 = sbr.rel (0) target = $region49
    $region48: #{tpu_custom_call.1} parent=1 // pred_region
      _
    $region49: #{tpu_custom_call.1} parent=1 // pred_fallthru
      _
    %432 = vsyncpa [#allocation3], 1

</llo_original>
